<compile_context>
chip_gen: v5e
topology: v5e:2x2
jax: 0.10.0
libtpu: 0.0.40
codegen_flags: <defaults>
</compile_context>

<pallas_src>
import jax
import jax.numpy as jnp
from jax.experimental import pallas as pl
from jax.experimental.pallas import tpu as pltpu


def attn_pool_kernel(x_ref, wt_ref, o_ref):
    # x_ref : (s, tq, L)  streams x packed-row tile x packed features
    # wt_ref: (L, L)      block-diagonal W^T (resident in VMEM across grid)
    # o_ref : (tq, L)
    s = x_ref.shape[0]
    wt = wt_ref[...]

    # Online softmax over the stream axis (s is small; unrolled): only
    # (tq, L)-sized f32 intermediates are live at any point.
    x0 = x_ref[0]
    m = jnp.dot(x0, wt, preferred_element_type=jnp.float32)   # running max
    den = jnp.ones_like(m)                                    # exp(m - m) = 1
    acc = x0.astype(jnp.float32)                              # x0 * exp(0)
    for si in range(1, s):
        xs = x_ref[si]
        ls = jnp.dot(xs, wt, preferred_element_type=jnp.float32)
        m_new = jnp.maximum(m, ls)
        alpha = jnp.exp(m - m_new)
        p = jnp.exp(ls - m_new)
        den = den * alpha + p
        acc = acc * alpha + xs.astype(jnp.float32) * p
        m = m_new

    # EUP approx reciprocal + one Newton step (~full f32 accuracy) instead of
    # a full-precision divide on the VALU.
    inv = pl.reciprocal(den, approx=True)
    inv = inv * (2.0 - den * inv)
    o_ref[...] = (acc * inv).astype(o_ref.dtype)


def attention_pool_reduce_stream(residuals, weight, num_streams, *, tq=None):
    """residuals: (b*num_streams, seq, d); weight: (d, d) torch Linear weight (out, in)."""
    bs, seq, d = residuals.shape
    s = num_streams
    b = bs // s
    assert b * s == bs, "leading dim must be batch * num_streams"

    # Lane packing: fold `pack` consecutive seq rows into the 128-lane axis.
    # (b, s, seq, d) and (b, s, seq//pack, pack*d) alias the same contiguous
    # buffer, so this is a free relabel.  Falls back to pack=1 if not possible.
    pack = 128 // d if (0 < d < 128 and 128 % d == 0) else 1
    if pack > 1 and seq % pack != 0:
        pack = 1
    L = pack * d
    seq_p = seq // pack

    x = residuals.reshape(b, s, seq_p, L)            # free view, no transpose
    # Block-diagonal W^T so x_packed @ wt_bd == per-chunk x @ W^T; pre-cast so
    # the MXU sees the input dtype with no per-step cast.
    wt_bd = jnp.kron(jnp.eye(pack, dtype=weight.dtype), weight.T)
    wt_bd = wt_bd.astype(residuals.dtype)

    itemsize = jnp.dtype(residuals.dtype).itemsize
    sublane = {1: 32, 2: 16}.get(itemsize, 8)        # dtype-aware sublane quantum

    if tq is None:
        # Size the packed-row tile from a VMEM budget: 2x double-buffered input
        # block + 2x output block + ~6 f32 (tq, L) live slabs in the kernel.
        budget = 24 * 1024 * 1024
        per_row = 2 * s * L * itemsize + 2 * L * itemsize + 6 * L * 4
        tq = max(sublane, budget // per_row)
    tq = min(tq, seq_p)
    if tq < seq_p:
        tq = max(sublane, (tq // sublane) * sublane)
    n_q = pl.cdiv(seq_p, tq)

    # v7x megacore: expose at least 2 parallel grid iterations when possible.
    if b * n_q < 2 and seq_p >= 2 * sublane:
        tq = max(sublane, (pl.cdiv(seq_p, 2) + sublane - 1) // sublane * sublane)
        n_q = pl.cdiv(seq_p, tq)

    grid = (b, n_q)

    # NOTE: if tq does not divide seq_p, the tail block's padded rows may see
    # garbage -> inf/NaN inside exp(); those rows are never written back, so
    # results stay correct (pick tq | seq_p when running under NaN checkers).

    in_block = s * tq * L * itemsize
    out_block = tq * L * itemsize
    interm = 6 * tq * L * 4
    need = 2 * in_block + 2 * out_block + interm + 2 * L * L * itemsize
    vmem_limit = int(min(48 * 1024 * 1024, max(32 * 1024 * 1024, 1.5 * need)))

    out = pl.pallas_call(
        attn_pool_kernel,
        out_shape=jax.ShapeDtypeStruct((b, seq_p, L), residuals.dtype),
        grid_spec=pltpu.PrefetchScalarGridSpec(
            num_scalar_prefetch=0,
            grid=grid,
            in_specs=[
                # Kernel sees (s, tq, L): streams on the leading axis, dense
                # (tq, 128) slabs on sublanes/lanes.
                pl.BlockSpec((pl.Squeezed(), s, tq, L),
                             lambda bi, qi: (bi, 0, qi, 0)),
                # Constant block index -> weight DMA'd once, stays resident.
                pl.BlockSpec((L, L), lambda bi, qi: (0, 0)),
            ],
            out_specs=pl.BlockSpec((pl.Squeezed(), tq, L),
                                   lambda bi, qi: (bi, qi, 0)),
        ),
        compiler_params=pltpu.CompilerParams(
            dimension_semantics=("parallel", "parallel"),
            vmem_limit_bytes=vmem_limit,
        ),
    )(x, wt_bd)
    return out.reshape(b, seq, d)                    # free relabel back


def _reference(residuals, weight, num_streams):
    bs, seq, d = residuals.shape
    s = num_streams
    b = bs // s
    xr = residuals.reshape(b, s, seq, d).transpose(0, 2, 1, 3)   # (b, seq, s, d)
    logits = jnp.einsum("bqsd,ed->bqse", xr, weight)             # x @ W^T
    attn = jax.nn.softmax(logits, axis=-2)
    return jnp.sum(xr * attn, axis=-2)                           # (b, seq, d)


if __name__ == "__main__":
    num_streams = 4
    dim = 32
    b = 2
    seq = 8

    key = jax.random.PRNGKey(0)
    kx, kw = jax.random.split(key)
    x = jax.random.normal(kx, (b * num_streams, seq, dim), dtype=jnp.float32)

    # 1) Module-initialized weight (identity), as in the PyTorch module.
    w_eye = jnp.eye(dim, dtype=jnp.float32)
    out_eye = jax.block_until_ready(
        attention_pool_reduce_stream(x, w_eye, num_streams))
    ref_eye = _reference(x, w_eye, num_streams)
    assert out_eye.shape == (b, seq, dim)
    assert jnp.allclose(out_eye, ref_eye, atol=1e-4, rtol=1e-4)

    # 2) Random, non-symmetric weight: catches W vs W^T orientation and
    #    block-diagonal lane-packing bugs an identity weight would miss.
    w_rnd = jax.random.normal(kw, (dim, dim), dtype=jnp.float32)
    out_rnd = jax.block_until_ready(
        attention_pool_reduce_stream(x, w_rnd, num_streams))
    ref_rnd = _reference(x, w_rnd, num_streams)
    assert jnp.allclose(out_rnd, ref_rnd, atol=1e-4, rtol=1e-4)

    print("KERNEL_OK")
</pallas_src>

<mosaic_0001>
module attributes {stable_mosaic.version = 11 : i64} {
  func.func @attn_pool_kernel(%arg0: i32, %arg1: i32, %arg2: memref<1x4x2x128xf32, #tpu.memory_space<vmem>>, %arg3: memref<128x128xf32, #tpu.memory_space<vmem>>, %arg4: memref<1x2x128xf32, #tpu.memory_space<vmem>>) attributes {dimension_semantics = [#tpu.dimension_semantics<parallel>, #tpu.dimension_semantics<parallel>], iteration_bounds = array<i64: 2, 1>, scalar_prefetch = 0 : i64, scratch_operands = 0 : i64, tpu.core_type = #tpu.core_type<tc>, window_params = [{transform_indices = @transform_0, window_bounds = array<i64: 1, 4, 2, 128>}, {pipeline_mode = #tpu.pipeline_mode<synchronous>, transform_indices = @transform_1, window_bounds = array<i64: 128, 128>}, {transform_indices = @transform_2, window_bounds = array<i64: 1, 2, 128>}]} {
    %c0 = arith.constant 0 : index
    %c0_0 = arith.constant 0 : index
    %0 = vector.load %arg3[%c0, %c0_0] : memref<128x128xf32, #tpu.memory_space<vmem>>, vector<128x128xf32>
    %c0_1 = arith.constant 0 : index
    %c0_2 = arith.constant 0 : index
    %c0_3 = arith.constant 0 : index
    %c0_4 = arith.constant 0 : index
    %1 = vector.load %arg2[%c0_1, %c0_2, %c0_3, %c0_4] : memref<1x4x2x128xf32, #tpu.memory_space<vmem>>, vector<1x1x2x128xf32>
    %2 = vector.shape_cast %1 : vector<1x1x2x128xf32> to vector<2x128xf32>
    %cst = arith.constant dense<0.000000e+00> : vector<2x128xf32>
    %3 = tpu.matmul %2, %0, %cst {dimension_numbers = #tpu.dot_dimension_numbers<[1], [0], [0], [1], [0, 0, 1, 1], [], []>} : vector<2x128xf32>, vector<128x128xf32>, vector<2x128xf32> -> vector<2x128xf32>
    %cst_5 = arith.constant 1.000000e+00 : f32
    %4 = vector.broadcast %cst_5 : f32 to vector<2x128xf32>
    %c0_6 = arith.constant 0 : index
    %c1 = arith.constant 1 : index
    %c0_7 = arith.constant 0 : index
    %c0_8 = arith.constant 0 : index
    %5 = vector.load %arg2[%c0_6, %c1, %c0_7, %c0_8] : memref<1x4x2x128xf32, #tpu.memory_space<vmem>>, vector<1x1x2x128xf32>
    %6 = vector.shape_cast %5 : vector<1x1x2x128xf32> to vector<2x128xf32>
    %cst_9 = arith.constant dense<0.000000e+00> : vector<2x128xf32>
    %7 = tpu.matmul %6, %0, %cst_9 {dimension_numbers = #tpu.dot_dimension_numbers<[1], [0], [0], [1], [0, 0, 1, 1], [], []>} : vector<2x128xf32>, vector<128x128xf32>, vector<2x128xf32> -> vector<2x128xf32>
    %8 = arith.maximumf %3, %7 : vector<2x128xf32>
    %9 = arith.subf %3, %8 : vector<2x128xf32>
    %10 = math.exp %9 : vector<2x128xf32>
    %11 = arith.subf %7, %8 : vector<2x128xf32>
    %12 = math.exp %11 : vector<2x128xf32>
    %13 = arith.mulf %4, %10 : vector<2x128xf32>
    %14 = arith.addf %13, %12 : vector<2x128xf32>
    %15 = arith.mulf %2, %10 : vector<2x128xf32>
    %16 = arith.mulf %6, %12 : vector<2x128xf32>
    %17 = arith.addf %15, %16 : vector<2x128xf32>
    %c0_10 = arith.constant 0 : index
    %c2 = arith.constant 2 : index
    %c0_11 = arith.constant 0 : index
    %c0_12 = arith.constant 0 : index
    %18 = vector.load %arg2[%c0_10, %c2, %c0_11, %c0_12] : memref<1x4x2x128xf32, #tpu.memory_space<vmem>>, vector<1x1x2x128xf32>
    %19 = vector.shape_cast %18 : vector<1x1x2x128xf32> to vector<2x128xf32>
    %cst_13 = arith.constant dense<0.000000e+00> : vector<2x128xf32>
    %20 = tpu.matmul %19, %0, %cst_13 {dimension_numbers = #tpu.dot_dimension_numbers<[1], [0], [0], [1], [0, 0, 1, 1], [], []>} : vector<2x128xf32>, vector<128x128xf32>, vector<2x128xf32> -> vector<2x128xf32>
    %21 = arith.maximumf %8, %20 : vector<2x128xf32>
    %22 = arith.subf %8, %21 : vector<2x128xf32>
    %23 = math.exp %22 : vector<2x128xf32>
    %24 = arith.subf %20, %21 : vector<2x128xf32>
    %25 = math.exp %24 : vector<2x128xf32>
    %26 = arith.mulf %14, %23 : vector<2x128xf32>
    %27 = arith.addf %26, %25 : vector<2x128xf32>
    %28 = arith.mulf %17, %23 : vector<2x128xf32>
    %29 = arith.mulf %19, %25 : vector<2x128xf32>
    %30 = arith.addf %28, %29 : vector<2x128xf32>
    %c0_14 = arith.constant 0 : index
    %c3 = arith.constant 3 : index
    %c0_15 = arith.constant 0 : index
    %c0_16 = arith.constant 0 : index
    %31 = vector.load %arg2[%c0_14, %c3, %c0_15, %c0_16] : memref<1x4x2x128xf32, #tpu.memory_space<vmem>>, vector<1x1x2x128xf32>
    %32 = vector.shape_cast %31 : vector<1x1x2x128xf32> to vector<2x128xf32>
    %cst_17 = arith.constant dense<0.000000e+00> : vector<2x128xf32>
    %33 = tpu.matmul %32, %0, %cst_17 {dimension_numbers = #tpu.dot_dimension_numbers<[1], [0], [0], [1], [0, 0, 1, 1], [], []>} : vector<2x128xf32>, vector<128x128xf32>, vector<2x128xf32> -> vector<2x128xf32>
    %34 = arith.maximumf %21, %33 : vector<2x128xf32>
    %35 = arith.subf %21, %34 : vector<2x128xf32>
    %36 = math.exp %35 : vector<2x128xf32>
    %37 = arith.subf %33, %34 : vector<2x128xf32>
    %38 = math.exp %37 : vector<2x128xf32>
    %39 = arith.mulf %27, %36 : vector<2x128xf32>
    %40 = arith.addf %39, %38 : vector<2x128xf32>
    %41 = arith.mulf %30, %36 : vector<2x128xf32>
    %42 = arith.mulf %32, %38 : vector<2x128xf32>
    %43 = arith.addf %41, %42 : vector<2x128xf32>
    %44 = tpu.reciprocal %40 {approx = true} : vector<2x128xf32> -> vector<2x128xf32>
    %45 = arith.mulf %40, %44 : vector<2x128xf32>
    %cst_18 = arith.constant 2.000000e+00 : f32
    %46 = vector.broadcast %cst_18 : f32 to vector<2x128xf32>
    %47 = arith.subf %46, %45 : vector<2x128xf32>
    %48 = arith.mulf %44, %47 : vector<2x128xf32>
    %49 = arith.mulf %43, %48 : vector<2x128xf32>
    %c0_19 = arith.constant 0 : index
    %c0_20 = arith.constant 0 : index
    %c0_21 = arith.constant 0 : index
    %50 = vector.load %arg4[%c0_19, %c0_20, %c0_21] : memref<1x2x128xf32, #tpu.memory_space<vmem>>, vector<1x2x128xf32>
    %51 = vector.shape_cast %50 : vector<1x2x128xf32> to vector<2x128xf32>
    %52 = vector.shape_cast %49 : vector<2x128xf32> to vector<1x2x128xf32>
    tpu.vector_store %arg4[%c0_19, %c0_20, %c0_21], %52 {strides = array<i32>} : memref<1x2x128xf32, #tpu.memory_space<vmem>>, vector<1x2x128xf32>,
    return
  }
  func.func @transform_0(%arg0: i32, %arg1: i32) -> (i32, i32, i32, i32) {
    %c0_i32 = arith.constant 0 : i32
    %c0_i32_0 = arith.constant 0 : i32
    %c0_i32_1 = arith.constant 0 : i32
    return %arg0, %c0_i32, %arg1, %c0_i32_0 : i32, i32, i32, i32
  }
  func.func @transform_1(%arg0: i32, %arg1: i32) -> (i32, i32) {
    %c0_i32 = arith.constant 0 : i32
    %c0_i32_0 = arith.constant 0 : i32
    %c0_i32_1 = arith.constant 0 : i32
    return %c0_i32, %c0_i32_0 : i32, i32
  }
  func.func @transform_2(%arg0: i32, %arg1: i32) -> (i32, i32, i32) {
    %c0_i32 = arith.constant 0 : i32
    %c0_i32_0 = arith.constant 0 : i32
    return %arg0, %arg1, %c0_i32 : i32, i32, i32
  }
}

</mosaic_0001>

<llo_original>
// kernel: tpu_custom_call.1
$region0: #{tpu_custom_call.1}
  #allocation0 [shape = 'u32[]', space=smem, size = 0x4, offset = 0x4, fixed_abs, tag = 'smem constant byte address 0x4 - core index']
  #allocation1 [shape = 'u32[72,128]{1,0:T(1,128)}', space=vmem, size = 0x9000, scoped, tag = 'internal scratch']
  %s0 = inlined_call_operand.hbm [shape: f32[2,4,2,128], index: 0, kind: input, shape index: {}]
  %s1 = inlined_call_operand.hbm [shape: f32[128,128], index: 1, kind: input, shape index: {}]
  %s2 = inlined_call_operand.hbm [shape: f32[2,2,128], index: 2, kind: output, shape index: {}]
  %s3 = sld [smem:[#allocation0]]
  $region49: #{tpu_custom_call.1} parent=0
    _
  %s5 = ssub.s32 1, %s3
  %s6 = scalar_select 0, %s5, %s3
  $region1: #{tpu_custom_call.1} parent=0
    #allocation2 [shape = 'u8[8192]{0}', space=vmem, size = 0x2000, scoped, tag = 'input window, operand 0']
    #allocation3 [shape = 's32[2]{0}', space=sflag, size = 0x8, scoped, tag = 'scoped memory for tpu_custom_call.1']
    #allocation4 [shape = 's32[2]{0}', space=sflag, size = 0x8, scoped, tag = 'scoped memory for tpu_custom_call.1']
    #allocation5 [shape = 'u8[65536]{0}', space=vmem, size = 0x10000, scoped, tag = 'input window, operand 1, single buffered']
    #allocation6 [shape = 's32[1]{0}', space=sflag, size = 0x4, scoped, tag = 'scoped memory for tpu_custom_call.1']
    #allocation7 [shape = 'u8[2048]{0}', space=vmem, size = 0x800, scoped, tag = 'output window, operand 0']
    %7 = vsyncpa [#allocation3], 0
    %s8 = scalar_lea.sflag [#allocation3], 1
    %9 = vsyncpa %s8, 0
    %10 = vsyncpa [#allocation6], 0
    %11 = vsyncpa [#allocation4], 0
    %s12 = scalar_lea.sflag [#allocation4], 1
    %13 = vsyncpa %s12, 0
    loop: start=0, step=1, limit=4
    $region2: #{tpu_custom_call.1} parent=1 // loop_pre_header
      _
    $region3: #{tpu_custom_call.1} parent=1 // loop_header
      %s15 = sphi 0, %s19
      %p16 = scmp.ge.s32.totalorder %s15, 4
      %s22 = sphi 0, %s34
      %s23 = sphi 0, %s30
      %s24 = sphi 0, %s22
      %s25 = sphi 0, %s23
      %s26 = sphi 0, %s24
      %s27 = sphi 0, %s25
      %s39 = sphi 0, %s41
      %s42 = sphi 0, %s39
      %s43 = sphi 0, %s42
      %s59 = sphi 0, %s43
      %s63 = sphi 0, %s63
      %s65 = sphi 0, %s63
      %s66 = sphi 0, %s65
      %s80 = sphi 0, %s66
      %s88 = sphi 0, %s90
      %s91 = sphi 0, %s88
      %s92 = sphi 0, %s91
      %s108 = sphi 0, %s92
    $region4: #{tpu_custom_call.1} parent=1 // loop_header_branch
      %18 = sbr.rel (%p16) target = $region8
    $region5: #{tpu_custom_call.1} parent=1 // loop_body
      %s20 = ssub.s32 %s15, 1
      %s21 = ssub.s32 %s15, 2
      %s28 = sadd.s32 1, %s23
      %p29 = scmp.ge.s32.totalorder %s28, 1
      %s30 = scalar_select %p29, 0, %s28
      %s31 = sadd.s32 1, %s22
      %s32 = scalar_select %p29, %s31, %s22
      %p33 = scmp.ge.s32.totalorder %s32, 2
      %s34 = scalar_select %p33, 0, %s32
      %s35 = ssub.s32 %s22, %s34
      %s36 = ssub.s32 %s23, %s30
      %s37 = sor.u32 %s35, %s36
      %p38 = scmp.eq.s32.totalorder %s37, 0
      %s40 = sadd.s32 %s39, 1
      %s41 = scalar_select %p38, %s39, %s40
      %p44 = pneg %p38
      %p45 = scmp.eq.s32.totalorder %s15, 1
      %p46 = por %p44, %p45
      %p47 = scmp.ne.s32.totalorder %s39, %s42
      %p48 = scmp.eq.s32.totalorder %s15, 0
      %p49 = por %p47, %p48
      %p50 = scmp.ne.s32.totalorder %s39, %s42
      %p51 = scmp.eq.s32.totalorder %s20, 1
      %p52 = por %p50, %p51
      %p53 = scmp.ne.s32.totalorder %s42, %s43
      %p54 = scmp.eq.s32.totalorder %s20, 0
      %p55 = por %p53, %p54
      %p56 = scmp.ne.s32.totalorder %s42, %s43
      %p57 = scmp.eq.s32.totalorder %s21, 1
      %p58 = por %p56, %p57
      %p60 = scmp.ne.s32.totalorder %s43, %s59
      %p61 = scmp.eq.s32.totalorder %s21, 0
      %p62 = por %p60, %p61
      %s64 = sadd.s32 %s63, 1
      %p67 = scmp.eq.s32.totalorder %s15, 1
      %p68 = scmp.ne.s32.totalorder %s63, %s65
      %p69 = scmp.eq.s32.totalorder %s15, 0
      %p70 = por %p68, %p69
      %p71 = scmp.ne.s32.totalorder %s63, %s65
      %p72 = scmp.eq.s32.totalorder %s20, 1
      %p73 = por %p71, %p72
      %p74 = scmp.ne.s32.totalorder %s65, %s66
      %p75 = scmp.eq.s32.totalorder %s20, 0
      %p76 = por %p74, %p75
      %p77 = scmp.ne.s32.totalorder %s65, %s66
      %p78 = scmp.eq.s32.totalorder %s21, 1
      %p79 = por %p77, %p78
      %p81 = scmp.ne.s32.totalorder %s66, %s80
      %p82 = scmp.eq.s32.totalorder %s21, 0
      %p83 = por %p81, %p82
      %s84 = ssub.s32 %s22, %s34
      %s85 = ssub.s32 %s23, %s30
      %s86 = sor.u32 %s84, %s85
      %p87 = scmp.eq.s32.totalorder %s86, 0
      %s89 = sadd.s32 %s88, 1
      %s90 = scalar_select %p87, %s88, %s89
      %p93 = pneg %p87
      %p94 = scmp.eq.s32.totalorder %s15, 1
      %p95 = por %p93, %p94
      %p96 = scmp.ne.s32.totalorder %s88, %s91
      %p97 = scmp.eq.s32.totalorder %s15, 0
      %p98 = por %p96, %p97
      %p99 = scmp.ne.s32.totalorder %s88, %s91
      %p100 = scmp.eq.s32.totalorder %s20, 1
      %p101 = por %p99, %p100
      %p102 = scmp.ne.s32.totalorder %s91, %s92
      %p103 = scmp.eq.s32.totalorder %s20, 0
      %p104 = por %p102, %p103
      %p105 = scmp.ne.s32.totalorder %s91, %s92
      %p106 = scmp.eq.s32.totalorder %s21, 1
      %p107 = por %p105, %p106
      %p109 = scmp.ne.s32.totalorder %s92, %s108
      %p110 = scmp.eq.s32.totalorder %s21, 0
      %p111 = por %p109, %p110
      %p112 = scmp.le.s32.totalorder 1, %s15
      %p113 = scmp.lt.s32.totalorder %s15, 3
      %p114 = pnand %p112, %p113
      %p115 = pneg %p114
      // Predicated region
      $region9: #{tpu_custom_call.1} parent=5 // pred_check
        _
      $region10: #{tpu_custom_call.1} parent=5 // pred_check_branch
        %117 = sbr.rel (%p114) target = $region12
      $region11: #{tpu_custom_call.1} parent=5 // pred_region
        %s118 = ssub.s32 %s15, 1
        // Predicated region
        $region13: #{tpu_custom_call.1} parent=11 // pred_check
          %p119 = pneg %p76
        $region14: #{tpu_custom_call.1} parent=11 // pred_check_branch
          %121 = sbr.rel (%p119) target = $region16
        $region15: #{tpu_custom_call.1} parent=11 // pred_region
          %123 = vsyncadd [#allocation6], 0
          %s124 = sshll.u32 %s1, 4
          %s125 = int_to_ptr.hbm [resolvable:$true] %s124
          %s126 = sshll.u32 [#allocation5], 4
          %s127 = int_to_ptr.vmem [resolvable:$true] %s126
          %132 = dma.hbm_to_vmem [thread:$0]  %s125, 2048, %s127, [#allocation6], 128, 128, 8
        $region16: #{tpu_custom_call.1} parent=11 // pred_fallthru
          _
      $region12: #{tpu_custom_call.1} parent=5 // pred_fallthru
        _
      %p133 = scmp.lt.s32.totalorder %s15, 2
      // Predicated region
      $region17: #{tpu_custom_call.1} parent=5 // pred_check
        %p134 = pneg %p133
      $region18: #{tpu_custom_call.1} parent=5 // pred_check_branch
        %136 = sbr.rel (%p134) target = $region20
      $region19: #{tpu_custom_call.1} parent=5 // pred_region
        // Predicated region
        $region21: #{tpu_custom_call.1} parent=19 // pred_check
          %p137 = pneg %p49
        $region22: #{tpu_custom_call.1} parent=19 // pred_check_branch
          %139 = sbr.rel (%p137) target = $region24
        $region23: #{tpu_custom_call.1} parent=19 // pred_region
          %s140 = sand.u32 %s39, 1
          %s141 = scalar_lea.sflag [#allocation3], %s140
          %s142 = sand.u32 %s39, 1
          %s143 = smul.addr %s142, 8
          %s144 = scalar_lea.vmem [#allocation2], %s143
          %146 = vsyncadd %s141, 0
          %s147 = smul.addr %s22, 4
          %s148 = sadd.s32 %s23, %s147
          %s149 = smul.addr %s148, 2
          %s150 = scalar_lea.hbm %s0, %s149
          %s151 = sshll.u32 %s150, 4
          %s152 = int_to_ptr.hbm [resolvable:$true] %s151
          %s153 = sshll.u32 %s144, 4
          %s154 = int_to_ptr.vmem [resolvable:$true] %s153
          %159 = dma.hbm_to_vmem [thread:$0]  %s152, 128, %s154, %s141, 32, 32, 2
        $region24: #{tpu_custom_call.1} parent=19 // pred_fallthru
          _
      $region20: #{tpu_custom_call.1} parent=5 // pred_fallthru
        _
      %p160 = scmp.le.s32.totalorder 1, %s15
      %p161 = scmp.lt.s32.totalorder %s15, 3
      %p162 = pnand %p160, %p161
      %p163 = pneg %p162
      // Predicated region
      $region25: #{tpu_custom_call.1} parent=5 // pred_check
        _
      $region26: #{tpu_custom_call.1} parent=5 // pred_check_branch
        %165 = sbr.rel (%p162) target = $region28
      $region27: #{tpu_custom_call.1} parent=5 // pred_region
        %s166 = ssub.s32 %s15, 1
        %s167 = sand.u32 %s42, 1
        %s168 = scalar_lea.sflag [#allocation3], %s167
        %s169 = sand.u32 %s42, 1
        %s170 = smul.addr %s169, 8
        %s171 = scalar_lea.vmem [#allocation2], %s170
        // Predicated region
        $region29: #{tpu_custom_call.1} parent=27 // pred_check
          %p172 = pneg %p55
        $region30: #{tpu_custom_call.1} parent=27 // pred_check_branch
          %174 = sbr.rel (%p172) target = $region32
        $region31: #{tpu_custom_call.1} parent=27 // pred_region
          %176 = dma.done %s168, 128
        $region32: #{tpu_custom_call.1} parent=27 // pred_fallthru
          _
        // Predicated region
        $region33: #{tpu_custom_call.1} parent=27 // pred_check
          %p177 = pneg %p76
        $region34: #{tpu_custom_call.1} parent=27 // pred_check_branch
          %179 = sbr.rel (%p177) target = $region36
        $region35: #{tpu_custom_call.1} parent=27 // pred_region
          %181 = dma.done [#allocation6], 2048
        $region36: #{tpu_custom_call.1} parent=27 // pred_fallthru
          _
        %s182 = sand.u32 %s42, 1
        %s183 = scalar_lea.sflag [#allocation3], %s182
        %s184 = sand.u32 %s42, 1
        %s185 = smul.addr %s184, 8
        %s186 = scalar_lea.vmem [#allocation2], %s185
        %p187 = pneg %p55
        %p188 = pneg %p52
        %p189 = pneg %p76
        %p190 = pneg %p73
        %p191 = pneg %p104
        %p192 = pneg %p101
        %s193 = sand.u32 %s91, 1
        %s194 = scalar_lea.sflag [#allocation4], %s193
        %s195 = sand.u32 %s91, 1
        %s196 = smul.addr %s195, 2
        %s197 = scalar_lea.vmem [#allocation7], %s196
        %v198 = vld [vmem:[#allocation5] sm:$0xff]
        %v199 = vld [vmem:[#allocation5 + $0x8] sm:$0xff]
        %v200 = vld [vmem:[#allocation5 + $0x10] sm:$0xff]
        %v201 = vld [vmem:[#allocation5 + $0x18] sm:$0xff]
        %v202 = vld [vmem:[#allocation5 + $0x20] sm:$0xff]
        %v203 = vld [vmem:[#allocation5 + $0x28] sm:$0xff]
        %v204 = vld [vmem:[#allocation5 + $0x30] sm:$0xff]
        %v205 = vld [vmem:[#allocation5 + $0x38] sm:$0xff]
        %v206 = vld [vmem:[#allocation5 + $0x40] sm:$0xff]
        %v207 = vld [vmem:[#allocation5 + $0x48] sm:$0xff]
        %v208 = vld [vmem:[#allocation5 + $0x50] sm:$0xff]
        %v209 = vld [vmem:[#allocation5 + $0x58] sm:$0xff]
        %v210 = vld [vmem:[#allocation5 + $0x60] sm:$0xff]
        %v211 = vld [vmem:[#allocation5 + $0x68] sm:$0xff]
        %v212 = vld [vmem:[#allocation5 + $0x70] sm:$0xff]
        %v213 = vld [vmem:[#allocation5 + $0x78] sm:$0xff]
        %v214 = vld [vmem:[%s171] sm:$0x3]
        %215 = vmatpush.msra.mxu0 %v213
        %216 = vmatpush.msra.mxu0 %v212
        %217 = vmatpush.msra.mxu0 %v211
        %218 = vmatpush.msra.mxu0 %v210
        %219 = vmatpush.msra.mxu0 %v209
        %220 = vmatpush.msra.mxu0 %v208
        %221 = vmatpush.msra.mxu0 %v207
        %222 = vmatpush.msra.mxu0 %v206
        %223 = vmatpush.msra.mxu0 %v205
        %224 = vmatpush.msra.mxu0 %v204
        %225 = vmatpush.msra.mxu0 %v203
        %226 = vmatpush.msra.mxu0 %v202
        %227 = vmatpush.msra.mxu0 %v201
        %228 = vmatpush.msra.mxu0 %v200
        %229 = vmatpush.msra.mxu0 %v199
        %230 = vmatpush.msra.mxu0 %v198
        %231 = vmatmul.f32.gmra.mxu0 %v214
        %v232 = vpop.f32.mrf.mxu0
        %v233 = vadd.f32 0.0, %v232
        %234 = vdwg.mxu0
        %s235 = scalar_lea.vmem %s171, 2 [#allocation2]
        %v236 = vld [vmem:[%s235] sm:$0x3]
        %237 = vmatpush.msra.mxu0 %v213
        %238 = vmatpush.msra.mxu0 %v212
        %239 = vmatpush.msra.mxu0 %v211
        %240 = vmatpush.msra.mxu0 %v210
        %241 = vmatpush.msra.mxu0 %v209
        %242 = vmatpush.msra.mxu0 %v208
        %243 = vmatpush.msra.mxu0 %v207
        %244 = vmatpush.msra.mxu0 %v206
        %245 = vmatpush.msra.mxu0 %v205
        %246 = vmatpush.msra.mxu0 %v204
        %247 = vmatpush.msra.mxu0 %v203
        %248 = vmatpush.msra.mxu0 %v202
        %249 = vmatpush.msra.mxu0 %v201
        %250 = vmatpush.msra.mxu0 %v200
        %251 = vmatpush.msra.mxu0 %v199
        %252 = vmatpush.msra.mxu0 %v198
        %253 = vmatmul.f32.gmra.mxu0 %v236
        %v254 = vpop.f32.mrf.mxu0
        %v255 = vadd.f32 0.0, %v254
        %256 = vdwg.mxu0
        %v257 = vmax.f32 %v233, %v255
        %v258 = vsub.f32 %v233, %v257
        %v259 = vmul.f32 %v258, 1.442695
        %v260 = vpow.pop %v259
        %v261 = vsub.f32 %v255, %v257
        %v262 = vmul.f32 %v261, 1.442695
        %v263 = vpow.pop %v262
        %v264 = vadd.f32 %v260, %v263
        %v265 = vmul.f32 %v214, %v260
        %v266 = vmul.f32 %v236, %v263
        %v267 = vadd.f32 %v265, %v266
        %s268 = scalar_lea.vmem %s171, 4 [#allocation2]
        %v269 = vld [vmem:[%s268] sm:$0x3]
        %270 = vmatpush.msra.mxu0 %v213
        %271 = vmatpush.msra.mxu0 %v212
        %272 = vmatpush.msra.mxu0 %v211
        %273 = vmatpush.msra.mxu0 %v210
        %274 = vmatpush.msra.mxu0 %v209
        %275 = vmatpush.msra.mxu0 %v208
        %276 = vmatpush.msra.mxu0 %v207
        %277 = vmatpush.msra.mxu0 %v206
        %278 = vmatpush.msra.mxu0 %v205
        %279 = vmatpush.msra.mxu0 %v204
        %280 = vmatpush.msra.mxu0 %v203
        %281 = vmatpush.msra.mxu0 %v202
        %282 = vmatpush.msra.mxu0 %v201
        %283 = vmatpush.msra.mxu0 %v200
        %284 = vmatpush.msra.mxu0 %v199
        %285 = vmatpush.msra.mxu0 %v198
        %286 = vmatmul.f32.gmra.mxu0 %v269
        %v287 = vpop.f32.mrf.mxu0
        %v288 = vadd.f32 0.0, %v287
        %289 = vdwg.mxu0
        %v290 = vmax.f32 %v257, %v288
        %v291 = vsub.f32 %v257, %v290
        %v292 = vmul.f32 %v291, 1.442695
        %v293 = vpow.pop %v292
        %v294 = vsub.f32 %v288, %v290
        %v295 = vmul.f32 %v294, 1.442695
        %v296 = vpow.pop %v295
        %v297 = vmul.f32 %v264, %v293
        %v298 = vadd.f32 %v297, %v296
        %v299 = vmul.f32 %v267, %v293
        %v300 = vmul.f32 %v269, %v296
        %v301 = vadd.f32 %v299, %v300
        %s302 = scalar_lea.vmem %s171, 6 [#allocation2]
        %v303 = vld [vmem:[%s302] sm:$0x3]
        %304 = vmatpush.msra.mxu0 %v213
        %305 = vmatpush.msra.mxu0 %v212
        %306 = vmatpush.msra.mxu0 %v211
        %307 = vmatpush.msra.mxu0 %v210
        %308 = vmatpush.msra.mxu0 %v209
        %309 = vmatpush.msra.mxu0 %v208
        %310 = vmatpush.msra.mxu0 %v207
        %311 = vmatpush.msra.mxu0 %v206
        %312 = vmatpush.msra.mxu0 %v205
        %313 = vmatpush.msra.mxu0 %v204
        %314 = vmatpush.msra.mxu0 %v203
        %315 = vmatpush.msra.mxu0 %v202
        %316 = vmatpush.msra.mxu0 %v201
        %317 = vmatpush.msra.mxu0 %v200
        %318 = vmatpush.msra.mxu0 %v199
        %319 = vmatpush.msra.mxu0 %v198
        %320 = vmatmul.f32.gmra.mxu0 %v303
        %v321 = vpop.f32.mrf.mxu0
        %v322 = vadd.f32 0.0, %v321
        %323 = vdwg.mxu0
        %v324 = vmax.f32 %v290, %v322
        %v325 = vsub.f32 %v290, %v324
        %v326 = vmul.f32 %v325, 1.442695
        %v327 = vpow.pop %v326
        %v328 = vsub.f32 %v322, %v324
        %v329 = vmul.f32 %v328, 1.442695
        %v330 = vpow.pop %v329
        %v331 = vmul.f32 %v298, %v327
        %v332 = vadd.f32 %v331, %v330
        %v333 = vmul.f32 %v301, %v327
        %v334 = vmul.f32 %v303, %v330
        %v335 = vadd.f32 %v333, %v334
        %v336 = vrcp.pop %v332
        %v337 = vmul.f32 %v332, %v336
        %v338 = vsub.f32 2.0, %v337
        %v339 = vmul.f32 %v336, %v338
        %v340 = vmul.f32 %v335, %v339
        %341 = vst [vmem:[%s197] sm:$0x3] %v340
        %s342 = sand.u32 %s91, 1
        %s343 = scalar_lea.sflag [#allocation4], %s342
        %s344 = sand.u32 %s91, 1
        %s345 = smul.addr %s344, 2
        %s346 = scalar_lea.vmem [#allocation7], %s345
        // Predicated region
        $region37: #{tpu_custom_call.1} parent=27 // pred_check
          %p347 = pneg %p101
        $region38: #{tpu_custom_call.1} parent=27 // pred_check_branch
          %349 = sbr.rel (%p347) target = $region40
        $region39: #{tpu_custom_call.1} parent=27 // pred_region
          %351 = vsyncadd %s343, 0
          %s352 = sadd.s32 %s25, %s24
          %s353 = smul.addr %s352, 2
          %s354 = scalar_lea.hbm %s2, %s353
          %s356 = sshll.u32 %s346, 4
          %s357 = int_to_ptr.vmem [resolvable:$true] %s356
          %s358 = sshll.u32 %s354, 4
          %s359 = int_to_ptr.hbm [resolvable:$true] %s358
          %361 = dma.vmem_to_hbm [thread:$0]  %s357, 32, %s359, %s343
        $region40: #{tpu_custom_call.1} parent=27 // pred_fallthru
          _
      $region28: #{tpu_custom_call.1} parent=5 // pred_fallthru
        _
      %p362 = scmp.le.s32.totalorder 2, %s15
      // Predicated region
      $region41: #{tpu_custom_call.1} parent=5 // pred_check
        %p363 = pneg %p362
      $region42: #{tpu_custom_call.1} parent=5 // pred_check_branch
        %365 = sbr.rel (%p363) target = $region44
      $region43: #{tpu_custom_call.1} parent=5 // pred_region
        %s366 = ssub.s32 %s15, 2
        // Predicated region
        $region45: #{tpu_custom_call.1} parent=43 // pred_check
          %p367 = pneg %p107
        $region46: #{tpu_custom_call.1} parent=43 // pred_check_branch
          %369 = sbr.rel (%p367) target = $region48
        $region47: #{tpu_custom_call.1} parent=43 // pred_region
          %s370 = sand.u32 %s92, 1
          %s371 = scalar_lea.sflag [#allocation4], %s370
          %s372 = sand.u32 %s92, 1
          %s373 = smul.addr %s372, 2
          %s374 = scalar_lea.vmem [#allocation7], %s373
          %376 = dma.done %s371, 32
        $region48: #{tpu_custom_call.1} parent=43 // pred_fallthru
          _
      $region44: #{tpu_custom_call.1} parent=5 // pred_fallthru
        _
    $region6: #{tpu_custom_call.1} parent=1 // loop_footer
      %s19 = sadd.s32 1, %s15
    $region7: #{tpu_custom_call.1} parent=1 // loop_footer_branch
      %14 = sbr.rel target = $region3
    $region8: #{tpu_custom_call.1} parent=1 // loop_exit
      _
    %377 = vsyncpa [#allocation3], 1
    %s378 = scalar_lea.sflag [#allocation3], 1
    %379 = vsyncpa %s378, 1
    %380 = vsyncpa [#allocation6], 1
    %381 = vsyncpa [#allocation4], 1
    %s382 = scalar_lea.sflag [#allocation4], 1
    %383 = vsyncpa %s382, 1

</llo_original>
